<compile_context>
chip_gen: v7x
topology: tpu7x:2x2x1
jax: 0.10.0
libtpu: 0.0.40
codegen_flags: <defaults>
</compile_context>

<pallas_src>
import functools

import jax
import jax.numpy as jnp
from jax.experimental import pallas as pl
from jax.experimental.pallas import tpu as pltpu


def _simple_attention_kernel(m_ref, w_ref, pool_ref, alpha_ref,
                             scores_scr, pool_acc, *, chunk):
    """One batch tile.

    m_ref:      (seq, tb, dim)   M block, native (seq, batch, dim) HBM layout
    w_ref:      (1, dim)         nn.Linear(input_dim, 1, bias=False).weight
    pool_ref:   (tb, dim)        pooled output block (lane-dense)
    alpha_ref:  (tb, seq)        softmax weights, already transposed (lane-dense)
    scores_scr: (seq, tb) f32    scratch: scores, then reused to hold alpha
    pool_acc:   (tb, dim) f32    scratch accumulator
    """
    seq_len = m_ref.shape[0]
    w = w_ref[...].astype(jnp.float32)                        # (1, dim)

    num_full = seq_len // chunk
    rem = seq_len - num_full * chunk

    # ---- pass 1: scores[s, b] = sum_d M[s, b, d] * w[d]  (streamed over seq) ----
    # VPU multiply + lane reduce instead of a degenerate N=1 MXU matmul; the
    # streaming avoids materializing a full (seq, tb, dim) f32 copy of the block.
    def _score_chunk(s0, size):
        m_chunk = m_ref[pl.ds(s0, size), :, :].astype(jnp.float32)   # (size, tb, dim)
        scores_scr[pl.ds(s0, size), :] = jnp.sum(m_chunk * w, axis=-1)

    @pl.loop(0, num_full)
    def _(i):
        _score_chunk(pl.multiple_of(i * chunk, chunk), chunk)

    if rem:
        _score_chunk(num_full * chunk, rem)

    # ---- softmax over seq (PyTorch dim=0), independent per batch column ----
    scores = scores_scr[...]                                  # (seq, tb) f32
    s_max = jnp.max(scores, axis=0, keepdims=True)            # (1, tb)
    e = jnp.exp(scores - s_max)                               # (seq, tb)
    denom = jnp.sum(e, axis=0, keepdims=True)                 # (1, tb)
    alpha = e / denom                                         # exact normalization
    scores_scr[...] = alpha                                   # reuse scratch for pass 2
    # Store alpha already transposed (tb, seq): tiny in-kernel XLU transpose,
    # so the wrapper never runs an extra XLA transpose pass over HBM.
    alpha_ref[...] = jnp.transpose(alpha, (1, 0)).astype(alpha_ref.dtype)

    # ---- pass 2: pool[b, :] = sum_s alpha[s, b] * M[s, b, :]  (streamed) ----
    pool_acc[...] = jnp.zeros_like(pool_acc)

    def _pool_chunk(s0, size):
        m_chunk = m_ref[pl.ds(s0, size), :, :].astype(jnp.float32)   # (size, tb, dim)
        a_chunk = scores_scr[pl.ds(s0, size), :]                     # (size, tb)
        pool_acc[...] += jnp.sum(a_chunk[:, :, None] * m_chunk, axis=0)

    @pl.loop(0, num_full)
    def _(i):
        _pool_chunk(pl.multiple_of(i * chunk, chunk), chunk)

    if rem:
        _pool_chunk(num_full * chunk, rem)

    pool_ref[...] = pool_acc[...].astype(pool_ref.dtype)


def simple_attention(M, weight, *, block_batch=None):
    """
    M:      (seq_len, batch, input_dim)  -- PyTorch convention, consumed as-is
    weight: (1, input_dim)               -- nn.Linear(input_dim, 1, bias=False).weight
    Returns (attn_pool (batch, input_dim), alpha (batch, 1, seq_len)).
    """
    seq_len, batch, dim = M.shape
    assert weight.shape == (1, dim)
    out_dtype = M.dtype
    in_itemsize = jnp.dtype(M.dtype).itemsize
    out_itemsize = jnp.dtype(out_dtype).itemsize

    # --- generation-aware VMEM budget ---
    try:
        vmem_cap = int(pltpu.get_tpu_info().vmem_capacity_bytes)
    except Exception:
        vmem_cap = 64 << 20                       # conservative (v7x-class VMEM)
    if vmem_cap >= (96 << 20):
        target_block_bytes = 12 << 20             # v5e / v6e (128 MiB VMEM)
    else:
        target_block_bytes = 6 << 20              # v7x-class (64 MiB VMEM)

    bytes_per_batch_row = max(1, seq_len * dim * in_itemsize)

    # --- batch-tile selection (tb only needs 8-sublane alignment) ---
    if block_batch is not None:
        tb = max(1, min(int(block_batch), batch))
        if tb < batch:
            tb = max(8, (tb // 8) * 8)
    elif batch <= 8:
        # Single tiny tile (block dims equal the array dims -> always legal).
        # TODO(synk): for very small batch with long seq, a seq-split
        # online-softmax variant would be needed to pipeline / use both v7x TCs.
        tb = batch
    else:
        tb_bytes = max(8, target_block_bytes // bytes_per_batch_row)
        # Keep >= ~8 grid steps when batch allows, so the DMA pipeline stays
        # busy and v7x's two TensorCores both get work.
        min_steps = 8 if batch >= 64 else max(2, batch // 8)
        tb_balance = pl.cdiv(batch, min_steps)
        tb = max(8, (min(tb_bytes, tb_balance) // 8) * 8)
    if tb >= batch:
        tb = batch

    grid = (pl.cdiv(batch, tb),)                  # last block may be ragged: no HBM pad of M

    # --- in-kernel seq streaming chunk: keep per-step temporaries <= ~4 MiB f32 ---
    cs = min(8, seq_len)
    while cs > 1 and cs * tb * dim * 4 > (4 << 20):
        cs //= 2
    cs = max(1, cs)

    # --- explicit VMEM limit (default scoped is 16/32 MiB depending on chip) ---
    est = (2 * seq_len * tb * dim * in_itemsize                       # M double-buffer
           + 2 * (tb * dim + tb * max(seq_len, 128)) * out_itemsize   # output double-buffers
           + (max(seq_len, 8) * max(tb, 128) + tb * dim) * 4          # scratches (padded)
           + 3 * cs * tb * dim * 4)                                   # streamed temporaries
    vmem_limit = int(min(vmem_cap - (4 << 20),
                         max(32 << 20, est * 3 // 2 + (2 << 20))))

    kernel = functools.partial(_simple_attention_kernel, chunk=cs)

    pool, alpha_t = pl.pallas_call(
        kernel,
        out_shape=(
            jax.ShapeDtypeStruct((batch, dim), out_dtype),
            jax.ShapeDtypeStruct((batch, seq_len), out_dtype),
        ),
        grid_spec=pltpu.PrefetchScalarGridSpec(
            num_scalar_prefetch=0,
            grid=grid,
            in_specs=[
                pl.BlockSpec((seq_len, tb, dim), lambda b: (0, b, 0)),
                pl.BlockSpec((1, dim), lambda b: (0, 0)),
            ],
            out_specs=[
                pl.BlockSpec((tb, dim), lambda b: (b, 0)),
                pl.BlockSpec((tb, seq_len), lambda b: (b, 0)),
            ],
            scratch_shapes=[
                pltpu.VMEM((seq_len, tb), jnp.float32),
                pltpu.VMEM((tb, dim), jnp.float32),
            ],
        ),
        compiler_params=pltpu.CompilerParams(
            dimension_semantics=("parallel",),
            vmem_limit_bytes=vmem_limit,
        ),
    )(M, weight)

    # alpha is already (batch, seq); just add the size-1 middle axis (free reshape).
    return pool, alpha_t[:, None, :]


def simple_attention_ref(M, weight):
    # Pure-JAX reference mirroring the PyTorch forward.
    scale = jnp.einsum("sbd,od->sbo", M, weight)               # (seq, batch, 1)
    alpha = jax.nn.softmax(scale, axis=0)                      # (seq, batch, 1)
    alpha_p = jnp.transpose(alpha, (1, 2, 0))                  # (batch, 1, seq)
    attn_pool = jnp.einsum("bos,bsd->bod", alpha_p,
                           jnp.transpose(M, (1, 0, 2)))[:, 0, :]
    return attn_pool, alpha_p


if __name__ == "__main__":
    # --- small demo shapes (matches the module's (seq, batch, dim) convention) ---
    seq_len, batch, input_dim = 8, 2, 32

    key = jax.random.PRNGKey(0)
    k_m, k_w = jax.random.split(key)
    M = jax.random.normal(k_m, (seq_len, batch, input_dim), dtype=jnp.float32)
    bound = 1.0 / (input_dim ** 0.5)
    weight = jax.random.uniform(k_w, (1, input_dim), dtype=jnp.float32,
                                minval=-bound, maxval=bound)

    pool, alpha = simple_attention(M, weight)
    pool = jax.block_until_ready(pool)
    alpha = jax.block_until_ready(alpha)

    pool_ref, alpha_ref = simple_attention_ref(M, weight)
    assert pool.shape == (batch, input_dim)
    assert alpha.shape == (batch, 1, seq_len)
    assert jnp.allclose(pool, pool_ref, atol=1e-5, rtol=1e-5)
    assert jnp.allclose(alpha, alpha_ref, atol=1e-5, rtol=1e-5)

    # --- exercise the multi-step, ragged-last-tile path (no pad of M) ---
    s2, b2, d2 = 16, 300, 128
    k2m, k2w = jax.random.split(jax.random.PRNGKey(1))
    M2 = jax.random.normal(k2m, (s2, b2, d2), dtype=jnp.float32)
    W2 = jax.random.uniform(k2w, (1, d2), dtype=jnp.float32,
                            minval=-1.0 / d2 ** 0.5, maxval=1.0 / d2 ** 0.5)
    pool2, alpha2 = simple_attention(M2, W2)       # default heuristic: multi-step grid, ragged tail
    pool2 = jax.block_until_ready(pool2)
    alpha2 = jax.block_until_ready(alpha2)
    pool2_ref, alpha2_ref = simple_attention_ref(M2, W2)
    assert pool2.shape == (b2, d2) and alpha2.shape == (b2, 1, s2)
    assert jnp.allclose(pool2, pool2_ref, atol=1e-4, rtol=1e-4)
    assert jnp.allclose(alpha2, alpha2_ref, atol=1e-4, rtol=1e-4)

    print("KERNEL_OK")
</pallas_src>

<mosaic_0001>
module attributes {stable_mosaic.version = 11 : i64} {
  func.func @_simple_attention_kernel(%arg0: i32, %arg1: memref<8x2x32xf32, #tpu.memory_space<vmem>>, %arg2: memref<1x32xf32, #tpu.memory_space<vmem>>, %arg3: memref<2x32xf32, #tpu.memory_space<vmem>>, %arg4: memref<2x8xf32, #tpu.memory_space<vmem>>, %arg5: memref<8x2xf32, #tpu.memory_space<vmem>>, %arg6: memref<2x32xf32, #tpu.memory_space<vmem>>) attributes {dimension_semantics = [#tpu.dimension_semantics<parallel>], iteration_bounds = array<i64: 1>, scalar_prefetch = 0 : i64, scratch_operands = 2 : i64, tpu.core_type = #tpu.core_type<tc>, window_params = [{transform_indices = @transform_0, window_bounds = array<i64: 8, 2, 32>}, {pipeline_mode = #tpu.pipeline_mode<synchronous>, transform_indices = @transform_1, window_bounds = array<i64: 1, 32>}, {transform_indices = @transform_2, window_bounds = array<i64: 2, 32>}, {transform_indices = @transform_3, window_bounds = array<i64: 2, 8>}]} {
    %c0 = arith.constant 0 : index
    %c0_0 = arith.constant 0 : index
    %0 = vector.load %arg2[%c0, %c0_0] : memref<1x32xf32, #tpu.memory_space<vmem>>, vector<1x32xf32>
    %c0_i32 = arith.constant 0 : i32
    %c1_i32 = arith.constant 1 : i32
    %1 = arith.muli %c0_i32, %c1_i32 : i32
    %c0_i32_1 = arith.constant 0 : i32
    %2 = arith.addi %c0_i32_1, %1 : i32
    %c8_i32 = arith.constant 8 : i32
    %3 = arith.muli %2, %c8_i32 : i32
    %4 = tpu.assume_multiple %3, 8 : i32
    %5 = arith.index_cast %4 : i32 to index
    %c0_2 = arith.constant 0 : index
    %c0_3 = arith.constant 0 : index
    %6 = vector.load %arg1[%5, %c0_2, %c0_3] : memref<8x2x32xf32, #tpu.memory_space<vmem>>, vector<8x2x32xf32>
    %7 = vector.shape_cast %0 : vector<1x32xf32> to vector<1x1x32xf32>
    %8 = vector.broadcast %7 : vector<1x1x32xf32> to vector<8x2x32xf32>
    %9 = arith.mulf %6, %8 : vector<8x2x32xf32>
    %cst = arith.constant dense<0.000000e+00> : vector<8x2xf32>
    %10 = vector.multi_reduction <add>, %9, %cst [2] : vector<8x2x32xf32> to vector<8x2xf32>
    %11 = arith.index_cast %4 : i32 to index
    %c0_4 = arith.constant 0 : index
    %12 = vector.load %arg5[%11, %c0_4] : memref<8x2xf32, #tpu.memory_space<vmem>>, vector<8x2xf32>
    tpu.vector_store %arg5[%11, %c0_4], %10 {strides = array<i32>} : memref<8x2xf32, #tpu.memory_space<vmem>>, vector<8x2xf32>,
    %c1_i32_5 = arith.constant 1 : i32
    %c0_6 = arith.constant 0 : index
    %c0_7 = arith.constant 0 : index
    %13 = vector.load %arg5[%c0_6, %c0_7] : memref<8x2xf32, #tpu.memory_space<vmem>>, vector<8x2xf32>
    %cst_8 = arith.constant dense<0xFF800000> : vector<2xf32>
    %14 = vector.multi_reduction <maximumf>, %13, %cst_8 [0] : vector<8x2xf32> to vector<2xf32>
    %15 = vector.shape_cast %14 : vector<2xf32> to vector<1x2xf32>
    %16 = vector.broadcast %15 : vector<1x2xf32> to vector<8x2xf32>
    %17 = arith.subf %13, %16 : vector<8x2xf32>
    %18 = math.exp %17 : vector<8x2xf32>
    %cst_9 = arith.constant dense<0.000000e+00> : vector<2xf32>
    %19 = vector.multi_reduction <add>, %18, %cst_9 [0] : vector<8x2xf32> to vector<2xf32>
    %20 = vector.shape_cast %19 : vector<2xf32> to vector<1x2xf32>
    %21 = vector.broadcast %20 : vector<1x2xf32> to vector<8x2xf32>
    %22 = arith.divf %18, %21 : vector<8x2xf32>
    %c0_10 = arith.constant 0 : index
    %c0_11 = arith.constant 0 : index
    %23 = vector.load %arg5[%c0_10, %c0_11] : memref<8x2xf32, #tpu.memory_space<vmem>>, vector<8x2xf32>
    tpu.vector_store %arg5[%c0_10, %c0_11], %22 {strides = array<i32>} : memref<8x2xf32, #tpu.memory_space<vmem>>, vector<8x2xf32>,
    %24 = tpu.transpose %22, [1, 0] : vector<8x2xf32> -> vector<2x8xf32>
    %c0_12 = arith.constant 0 : index
    %c0_13 = arith.constant 0 : index
    %25 = vector.load %arg4[%c0_12, %c0_13] : memref<2x8xf32, #tpu.memory_space<vmem>>, vector<2x8xf32>
    tpu.vector_store %arg4[%c0_12, %c0_13], %24 {strides = array<i32>} : memref<2x8xf32, #tpu.memory_space<vmem>>, vector<2x8xf32>,
    %cst_14 = arith.constant 0.000000e+00 : f32
    %26 = vector.broadcast %cst_14 : f32 to vector<2x32xf32>
    %c0_15 = arith.constant 0 : index
    %c0_16 = arith.constant 0 : index
    %27 = vector.load %arg6[%c0_15, %c0_16] : memref<2x32xf32, #tpu.memory_space<vmem>>, vector<2x32xf32>
    tpu.vector_store %arg6[%c0_15, %c0_16], %26 {strides = array<i32>} : memref<2x32xf32, #tpu.memory_space<vmem>>, vector<2x32xf32>,
    %c0_i32_17 = arith.constant 0 : i32
    %c1_i32_18 = arith.constant 1 : i32
    %28 = arith.muli %c0_i32_17, %c1_i32_18 : i32
    %c0_i32_19 = arith.constant 0 : i32
    %29 = arith.addi %c0_i32_19, %28 : i32
    %c8_i32_20 = arith.constant 8 : i32
    %30 = arith.muli %29, %c8_i32_20 : i32
    %31 = tpu.assume_multiple %30, 8 : i32
    %32 = arith.index_cast %31 : i32 to index
    %c0_21 = arith.constant 0 : index
    %c0_22 = arith.constant 0 : index
    %33 = vector.load %arg1[%32, %c0_21, %c0_22] : memref<8x2x32xf32, #tpu.memory_space<vmem>>, vector<8x2x32xf32>
    %34 = arith.index_cast %31 : i32 to index
    %c0_23 = arith.constant 0 : index
    %35 = vector.load %arg5[%34, %c0_23] : memref<8x2xf32, #tpu.memory_space<vmem>>, vector<8x2xf32>
    %c0_24 = arith.constant 0 : index
    %c0_25 = arith.constant 0 : index
    %36 = vector.load %arg6[%c0_24, %c0_25] : memref<2x32xf32, #tpu.memory_space<vmem>>, vector<2x32xf32>
    %37 = vector.shape_cast %35 : vector<8x2xf32> to vector<8x2x1xf32>
    %38 = vector.broadcast %37 : vector<8x2x1xf32> to vector<8x2x32xf32>
    %39 = arith.mulf %38, %33 : vector<8x2x32xf32>
    %cst_26 = arith.constant dense<0.000000e+00> : vector<2x32xf32>
    %40 = vector.multi_reduction <add>, %39, %cst_26 [0] : vector<8x2x32xf32> to vector<2x32xf32>
    %41 = arith.addf %36, %40 : vector<2x32xf32>
    %c0_27 = arith.constant 0 : index
    %c0_28 = arith.constant 0 : index
    %42 = vector.load %arg6[%c0_27, %c0_28] : memref<2x32xf32, #tpu.memory_space<vmem>>, vector<2x32xf32>
    tpu.vector_store %arg6[%c0_27, %c0_28], %41 {strides = array<i32>} : memref<2x32xf32, #tpu.memory_space<vmem>>, vector<2x32xf32>,
    %c1_i32_29 = arith.constant 1 : i32
    %c0_30 = arith.constant 0 : index
    %c0_31 = arith.constant 0 : index
    %43 = vector.load %arg6[%c0_30, %c0_31] : memref<2x32xf32, #tpu.memory_space<vmem>>, vector<2x32xf32>
    %c0_32 = arith.constant 0 : index
    %c0_33 = arith.constant 0 : index
    %44 = vector.load %arg3[%c0_32, %c0_33] : memref<2x32xf32, #tpu.memory_space<vmem>>, vector<2x32xf32>
    tpu.vector_store %arg3[%c0_32, %c0_33], %43 {strides = array<i32>} : memref<2x32xf32, #tpu.memory_space<vmem>>, vector<2x32xf32>,
    return
  }
  func.func @transform_0(%arg0: i32) -> (i32, i32, i32) {
    %c0_i32 = arith.constant 0 : i32
    %c0_i32_0 = arith.constant 0 : i32
    %c0_i32_1 = arith.constant 0 : i32
    return %c0_i32, %arg0, %c0_i32_0 : i32, i32, i32
  }
  func.func @transform_1(%arg0: i32) -> (i32, i32) {
    %c0_i32 = arith.constant 0 : i32
    %c0_i32_0 = arith.constant 0 : i32
    %c0_i32_1 = arith.constant 0 : i32
    return %c0_i32, %c0_i32_0 : i32, i32
  }
  func.func @transform_2(%arg0: i32) -> (i32, i32) {
    %c0_i32 = arith.constant 0 : i32
    %c0_i32_0 = arith.constant 0 : i32
    return %arg0, %c0_i32 : i32, i32
  }
  func.func @transform_3(%arg0: i32) -> (i32, i32) {
    %c0_i32 = arith.constant 0 : i32
    %c0_i32_0 = arith.constant 0 : i32
    return %arg0, %c0_i32 : i32, i32
  }
}

</mosaic_0001>

<llo_original>
// kernel: tpu_custom_call.1
$region0: #{tpu_custom_call.1}
  #allocation0 [shape = 'u32[]', space=smem, size = 0x4, offset = 0x4, fixed_abs, tag = 'smem constant byte address 0x4 - core index']
  #allocation1 [shape = 'u32[144,128]{1,0:T(1,128)}', space=vmem, size = 0x12000, scoped, tag = 'internal scratch']
  #allocation2 [shape = 'f32[8,2]{1,0:T(8,128)}', space=vmem, size = 0x1000, scoped, tag = 'scratch operand']
  #allocation3 [shape = 'f32[2,32]{1,0:T(2,128)}', space=vmem, size = 0x400, scoped, tag = 'scratch operand']
  %s0 = inlined_call_operand.hbm [shape: f32[8,2,32], index: 0, kind: input, shape index: {}]
  %s1 = inlined_call_operand.vmem [shape: f32[1,32], index: 1, kind: input, shape index: {}]
  %s2 = inlined_call_operand.hbm [shape: f32[2,32], index: 2, kind: output, shape index: {0}]
  %s3 = inlined_call_operand.hbm [shape: f32[2,8], index: 3, kind: output, shape index: {1}]
  %4 = xla_tuple %s2, %s3
  %s5 = sld [smem:[#allocation0]]
  $region30: #{tpu_custom_call.1} parent=0
    _
  %s7 = ssub.s32 1, %s5
  %s8 = scalar_select 0, %s7, %s5
  $region1: #{tpu_custom_call.1} parent=0
    #allocation4 [shape = 'u8[8192]{0}', space=vmem, size = 0x2000, scoped, tag = 'input window, operand 0, single buffered']
    #allocation5 [shape = 's32[1]{0}', space=sflag, size = 0x4, scoped, tag = 'scoped memory for tpu_custom_call.1']
    #allocation6 [shape = 's32[1]{0}', space=sflag, size = 0x4, scoped, tag = 'scoped memory for tpu_custom_call.1']
    #allocation7 [shape = 'u8[1024]{0}', space=vmem, size = 0x400, scoped, tag = 'output window, operand 0, single buffered']
    #allocation8 [shape = 'u8[1024]{0}', space=vmem, size = 0x400, scoped, tag = 'output window, operand 1, single buffered']
    #allocation9 [shape = 's32[1]{0}', space=sflag, size = 0x4, scoped, tag = 'scoped memory for tpu_custom_call.1']
    %9 = vsyncpa [#allocation5], 0
    %10 = vsyncpa [#allocation6], 0
    %11 = vsyncpa [#allocation9], 0
    // Predicated region
    $region2: #{tpu_custom_call.1} parent=1 // pred_check
      _
    $region3: #{tpu_custom_call.1} parent=1 // pred_check_branch
      %13 = sbr.rel (0) target = $region5
    $region4: #{tpu_custom_call.1} parent=1 // pred_region
      %s15 = ssub.s32 256, 256
      %16 = vsyncadd [#allocation5], %s15
      %s17 = sshll.u32 [#allocation4], 4
      %s18 = int_to_ptr.vmem [resolvable:$true] %s17
      %23 = dma.hbm_to_vmem [thread:$0]  %s0, 256, %s18, [#allocation5], 32, 32, 2
    $region5: #{tpu_custom_call.1} parent=1 // pred_fallthru
      _
    // Predicated region
    $region6: #{tpu_custom_call.1} parent=1 // pred_check
      _
    $region7: #{tpu_custom_call.1} parent=1 // pred_check_branch
      %25 = sbr.rel (0) target = $region9
    $region8: #{tpu_custom_call.1} parent=1 // pred_region
      _
    $region9: #{tpu_custom_call.1} parent=1 // pred_fallthru
      _
    // Predicated region
    $region10: #{tpu_custom_call.1} parent=1 // pred_check
      _
    $region11: #{tpu_custom_call.1} parent=1 // pred_check_branch
      %27 = sbr.rel (0) target = $region13
    $region12: #{tpu_custom_call.1} parent=1 // pred_region
      %28 = dma.done [#allocation5], 256
    $region13: #{tpu_custom_call.1} parent=1 // pred_fallthru
      _
    %v29 = vld [vmem:[%s1] sm:$0x1]
    %s30 = smul.u32 0, 2
    %s31 = scalar_lea.vmem [#allocation4], %s30
    %v32 = vld [vmem:[%s31] sm:$0x3]
    %v33 = vld [vmem:[%s31 + $0x2] sm:$0x3]
    %v34 = vld [vmem:[%s31 + $0x4] sm:$0x3]
    %v35 = vld [vmem:[%s31 + $0x6] sm:$0x3]
    %v36 = vld [vmem:[%s31 + $0x8] sm:$0x3]
    %v37 = vld [vmem:[%s31 + $0xa] sm:$0x3]
    %v38 = vld [vmem:[%s31 + $0xc] sm:$0x3]
    %v39 = vld [vmem:[%s31 + $0xe] sm:$0x3]
    %v41 = vlaneseq
    %v42 = vshrl.u32 %v41, 7
    %v43 = vsub.s32 0, %v42
    %v44 = vrot.slane %v29, %v43
    %v46 = vmul.f32 %v32, %v44
    %v47 = vmul.f32 %v33, %v44
    %v48 = vmul.f32 %v34, %v44
    %v49 = vmul.f32 %v35, %v44
    %v50 = vmul.f32 %v36, %v44
    %v51 = vmul.f32 %v37, %v44
    %v52 = vmul.f32 %v38, %v44
    %v53 = vmul.f32 %v39, %v44
    %vm54 = vcmask 254976
    %v55 = vsel %vm54, %v46, 0.0
    %56 = vadd.xlane.f32.xlu0 %v55
    %v57 = vpop.xlane.xlu0 %56
    %v58 = vsel %vm54, %v47, 0.0
    %59 = vadd.xlane.f32.xlu0 %v58
    %v60 = vpop.xlane.xlu0 %59
    %v61 = vsel %vm54, %v48, 0.0
    %62 = vadd.xlane.f32.xlu0 %v61
    %v63 = vpop.xlane.xlu0 %62
    %v64 = vsel %vm54, %v49, 0.0
    %65 = vadd.xlane.f32.xlu0 %v64
    %v66 = vpop.xlane.xlu0 %65
    %v67 = vsel %vm54, %v50, 0.0
    %68 = vadd.xlane.f32.xlu0 %v67
    %v69 = vpop.xlane.xlu0 %68
    %v70 = vsel %vm54, %v51, 0.0
    %71 = vadd.xlane.f32.xlu0 %v70
    %v72 = vpop.xlane.xlu0 %71
    %v73 = vsel %vm54, %v52, 0.0
    %74 = vadd.xlane.f32.xlu0 %v73
    %v75 = vpop.xlane.xlu0 %74
    %v76 = vsel %vm54, %v53, 0.0
    %77 = vadd.xlane.f32.xlu0 %v76
    %v78 = vpop.xlane.xlu0 %77
    %v87 = vlaneseq
    %v88 = vand.u32 %v87, 127
    %v89 = vlaneseq
    %v90 = vshrl.u32 %v89, 7
    %v91 = vsub.s32 %v88, %v90
    %v92 = vrot.slane %v57, %v91
    %v93 = vlaneseq
    %v94 = vshrl.u32 %v93, 7
    %v95 = vsub.s32 %v88, %v94
    %v96 = vrot.slane %v60, %v95
    %v97 = vlaneseq
    %v98 = vshrl.u32 %v97, 7
    %v99 = vsub.s32 %v88, %v98
    %v100 = vrot.slane %v63, %v99
    %v101 = vlaneseq
    %v102 = vshrl.u32 %v101, 7
    %v103 = vsub.s32 %v88, %v102
    %v104 = vrot.slane %v66, %v103
    %v105 = vlaneseq
    %v106 = vshrl.u32 %v105, 7
    %v107 = vsub.s32 %v88, %v106
    %v108 = vrot.slane %v69, %v107
    %v109 = vlaneseq
    %v110 = vshrl.u32 %v109, 7
    %v111 = vsub.s32 %v88, %v110
    %v112 = vrot.slane %v72, %v111
    %v113 = vlaneseq
    %v114 = vshrl.u32 %v113, 7
    %v115 = vsub.s32 %v88, %v114
    %v116 = vrot.slane %v75, %v115
    %v117 = vlaneseq
    %v118 = vshrl.u32 %v117, 7
    %v119 = vsub.s32 %v88, %v118
    %v120 = vrot.slane %v78, %v119
    %vm121 = vcmask 1041409
    %v122 = vsel %vm121, %v96, %v92
    %vm123 = vcmask 1042434
    %v124 = vsel %vm123, %v100, %v122
    %vm125 = vcmask 1043459
    %v126 = vsel %vm125, %v104, %v124
    %vm127 = vcmask 1044484
    %v128 = vsel %vm127, %v108, %v126
    %vm129 = vcmask 1045509
    %v130 = vsel %vm129, %v112, %v128
    %vm131 = vcmask 1046534
    %v132 = vsel %vm131, %v116, %v130
    %vm133 = vcmask 1047559
    %v134 = vsel %vm133, %v120, %v132
    %vm136 = vcmask 15360
    %137 = vst.msk [vmem:[#allocation2] sm:$0xff] %vm136, %v134
    %v138 = vld [vmem:[#allocation2] sm:$0xff]
    %v139 = vsel %vm136, %v138, -inf
    %v140 = vrot.slane %v139, 4
    %v141 = vmax.f32 %v139, %v140
    %v142 = vrot.slane %v141, 2
    %v143 = vmax.f32 %v141, %v142
    %v144 = vrot.slane %v143, 1
    %v145 = vmax.f32 %v143, %v144
    %v146 = vsub.f32 %v138, %v145
    %v147 = vmul.f32 %v146, 1.442695
    %v148 = vpow.pop %v147
    %v149 = vsel %vm136, %v148, 0.0
    %v150 = vrot.slane %v149, 4
    %v151 = vadd.f32 %v149, %v150
    %v152 = vrot.slane %v151, 2
    %v153 = vadd.f32 %v151, %v152
    %v154 = vrot.slane %v153, 1
    %v155 = vadd.f32 %v153, %v154
    %v156 = vrcp.pop %v155
    %v157 = vmul.f32 %v148, %v156
    %158 = vst.msk [vmem:[#allocation2] sm:$0xff] %vm136, %v157
    %159 = vxpose.xlu0.b32.start [1/16] %v157, 128
    %160 = vxpose.xlu0.b32.cont [2/16] 0.0, 128
    %161 = vxpose.xlu0.b32.cont [3/16] 0.0, 128
    %162 = vxpose.xlu0.b32.cont [4/16] 0.0, 128
    %163 = vxpose.xlu0.b32.cont [5/16] 0.0, 128
    %164 = vxpose.xlu0.b32.cont [6/16] 0.0, 128
    %165 = vxpose.xlu0.b32.cont [7/16] 0.0, 128
    %166 = vxpose.xlu0.b32.cont [8/16] 0.0, 128
    %167 = vxpose.xlu0.b32.cont [9/16] 0.0, 128
    %168 = vxpose.xlu0.b32.cont [10/16] 0.0, 128
    %169 = vxpose.xlu0.b32.cont [11/16] 0.0, 128
    %170 = vxpose.xlu0.b32.cont [12/16] 0.0, 128
    %171 = vxpose.xlu0.b32.cont [13/16] 0.0, 128
    %172 = vxpose.xlu0.b32.cont [14/16] 0.0, 128
    %173 = vxpose.xlu0.b32.cont [15/16] 0.0, 128
    %174 = vxpose.xlu0.b32.end [16/16] 0.0, 128
    %v175 = vpop.trf.xlu0
    %v176 = vpop.trf.xlu0
    %v177 = vpop.trf.xlu0
    %v178 = vpop.trf.xlu0
    %v179 = vpop.trf.xlu0
    %v180 = vpop.trf.xlu0
    %v181 = vpop.trf.xlu0
    %v182 = vpop.trf.xlu0
    %v183 = vpop.trf.xlu0
    %v184 = vpop.trf.xlu0
    %v185 = vpop.trf.xlu0
    %v186 = vpop.trf.xlu0
    %v187 = vpop.trf.xlu0
    %v188 = vpop.trf.xlu0
    %v189 = vpop.trf.xlu0
    %v190 = vpop.trf.xlu0
    %vm191 = vcmask 58368
    %192 = vst.msk [vmem:[#allocation8] sm:$0x3] %vm191, %v175
    %193 = vst.msk [vmem:[#allocation3] sm:$0x3] %vm54, 0.0
    %v194 = vld [vmem:[%s31] sm:$0x3]
    %v195 = vld [vmem:[%s31 + $0x2] sm:$0x3]
    %v196 = vld [vmem:[%s31 + $0x4] sm:$0x3]
    %v197 = vld [vmem:[%s31 + $0x6] sm:$0x3]
    %v198 = vld [vmem:[%s31 + $0x8] sm:$0x3]
    %v199 = vld [vmem:[%s31 + $0xa] sm:$0x3]
    %v200 = vld [vmem:[%s31 + $0xc] sm:$0x3]
    %v201 = vld [vmem:[%s31 + $0xe] sm:$0x3]
    %v202 = vld [vmem:[#allocation2] sm:$0xff]
    %v203 = vld [vmem:[#allocation3] sm:$0x3]
    %v204 = vlaneseq
    %v205 = vshrl.u32 %v204, 7
    %v206 = vsub.s32 0, %v205
    %v207 = vrot.slane %v202, %v206
    %209 = vbcast.lane.b32.xlu0 %v207, 256
    %v210 = vpop.permute.xlu0 %209
    %v211 = vlaneseq
    %v212 = vshrl.u32 %v211, 7
    %v213 = vsub.s32 1, %v212
    %v214 = vrot.slane %v202, %v213
    %216 = vbcast.lane.b32.xlu0 %v214, 256
    %v217 = vpop.permute.xlu0 %216
    %v218 = vlaneseq
    %v219 = vshrl.u32 %v218, 7
    %v220 = vsub.s32 2, %v219
    %v221 = vrot.slane %v202, %v220
    %223 = vbcast.lane.b32.xlu0 %v221, 256
    %v224 = vpop.permute.xlu0 %223
    %v225 = vlaneseq
    %v226 = vshrl.u32 %v225, 7
    %v227 = vsub.s32 3, %v226
    %v228 = vrot.slane %v202, %v227
    %230 = vbcast.lane.b32.xlu0 %v228, 256
    %v231 = vpop.permute.xlu0 %230
    %v232 = vlaneseq
    %v233 = vshrl.u32 %v232, 7
    %v234 = vsub.s32 4, %v233
    %v235 = vrot.slane %v202, %v234
    %237 = vbcast.lane.b32.xlu0 %v235, 256
    %v238 = vpop.permute.xlu0 %237
    %v239 = vlaneseq
    %v240 = vshrl.u32 %v239, 7
    %v241 = vsub.s32 5, %v240
    %v242 = vrot.slane %v202, %v241
    %244 = vbcast.lane.b32.xlu0 %v242, 256
    %v245 = vpop.permute.xlu0 %244
    %v246 = vlaneseq
    %v247 = vshrl.u32 %v246, 7
    %v248 = vsub.s32 6, %v247
    %v249 = vrot.slane %v202, %v248
    %251 = vbcast.lane.b32.xlu0 %v249, 256
    %v252 = vpop.permute.xlu0 %251
    %v253 = vlaneseq
    %v254 = vshrl.u32 %v253, 7
    %v255 = vsub.s32 7, %v254
    %v256 = vrot.slane %v202, %v255
    %258 = vbcast.lane.b32.xlu0 %v256, 256
    %v259 = vpop.permute.xlu0 %258
    %v260 = vmul.f32 %v210, %v194
    %v261 = vmul.f32 %v217, %v195
    %v262 = vmul.f32 %v224, %v196
    %v263 = vmul.f32 %v231, %v197
    %v264 = vmul.f32 %v238, %v198
    %v265 = vmul.f32 %v245, %v199
    %v266 = vmul.f32 %v252, %v200
    %v267 = vmul.f32 %v259, %v201
    %v268 = vsel %vm54, %v260, 0.0
    %v269 = vsel %vm54, %v261, 0.0
    %v270 = vadd.f32 %v268, %v269
    %v271 = vsel %vm54, %v262, 0.0
    %v272 = vadd.f32 %v270, %v271
    %v273 = vsel %vm54, %v263, 0.0
    %v274 = vadd.f32 %v272, %v273
    %v275 = vsel %vm54, %v264, 0.0
    %v276 = vadd.f32 %v274, %v275
    %v277 = vsel %vm54, %v265, 0.0
    %v278 = vadd.f32 %v276, %v277
    %v279 = vsel %vm54, %v266, 0.0
    %v280 = vadd.f32 %v278, %v279
    %v281 = vsel %vm54, %v267, 0.0
    %v282 = vadd.f32 %v280, %v281
    %v283 = vadd.f32 %v203, %v282
    %284 = vst.msk [vmem:[#allocation3] sm:$0x3] %vm54, %v283
    %v285 = vld [vmem:[#allocation3] sm:$0x3]
    %286 = vst.msk [vmem:[#allocation7] sm:$0x3] %vm54, %v285
    // Predicated region
    $region14: #{tpu_custom_call.1} parent=1 // pred_check
      _
    $region15: #{tpu_custom_call.1} parent=1 // pred_check_branch
      %288 = sbr.rel (0) target = $region17
    $region16: #{tpu_custom_call.1} parent=1 // pred_region
      %s290 = ssub.s32 32, 32
      %291 = vsyncadd [#allocation6], %s290
      %s293 = sshll.u32 [#allocation7], 4
      %s294 = int_to_ptr.vmem [resolvable:$true] %s293
      %296 = dma.vmem_to_hbm [thread:$0]  %s294, 32, %s2, [#allocation6]
    $region17: #{tpu_custom_call.1} parent=1 // pred_fallthru
      _
    // Predicated region
    $region18: #{tpu_custom_call.1} parent=1 // pred_check
      _
    $region19: #{tpu_custom_call.1} parent=1 // pred_check_branch
      %298 = sbr.rel (0) target = $region21
    $region20: #{tpu_custom_call.1} parent=1 // pred_region
      %s300 = ssub.s32 32, 32
      %301 = vsyncadd [#allocation9], %s300
      %s303 = sshll.u32 [#allocation8], 4
      %s304 = int_to_ptr.vmem [resolvable:$true] %s303
      %306 = dma.vmem_to_hbm [thread:$0]  %s304, 32, %s3, [#allocation9]
    $region21: #{tpu_custom_call.1} parent=1 // pred_fallthru
      _
    // Predicated region
    $region22: #{tpu_custom_call.1} parent=1 // pred_check
      _
    $region23: #{tpu_custom_call.1} parent=1 // pred_check_branch
      %308 = sbr.rel (0) target = $region25
    $region24: #{tpu_custom_call.1} parent=1 // pred_region
      %309 = dma.done [#allocation6], 32
    $region25: #{tpu_custom_call.1} parent=1 // pred_fallthru
      _
    // Predicated region
    $region26: #{tpu_custom_call.1} parent=1 // pred_check
      _
    $region27: #{tpu_custom_call.1} parent=1 // pred_check_branch
      %311 = sbr.rel (0) target = $region29
    $region28: #{tpu_custom_call.1} parent=1 // pred_region
      %312 = dma.done [#allocation9], 32
    $region29: #{tpu_custom_call.1} parent=1 // pred_fallthru
      _
    %313 = vsyncpa [#allocation5], 1
    %314 = vsyncpa [#allocation6], 1
    %315 = vsyncpa [#allocation9], 1

</llo_original>
